<compile_context>
chip_gen: v7x
topology: tpu7x:2x2x1
jax: 0.10.0
libtpu: 0.0.40
codegen_flags: <defaults>
</compile_context>

<pallas_src>
import functools

import jax
import jax.numpy as jnp
from jax.experimental import pallas as pl
from jax.experimental.pallas import tpu as pltpu


def _smooth_bce_neg_kernel(logits_ref, target_ref, out_ref, *, pos, neg):
    # logits_ref: (TILE_N, C) any float dtype (bf16/f32) in VMEM
    # target_ref: (TILE_N, C) int/float in VMEM (values in {1, 0, other=ignore})
    # out_ref:    (TILE_N, C) float32 in VMEM
    x = logits_ref[...].astype(jnp.float32)
    t = target_ref[...].astype(jnp.float32)

    is_pos = t == 1.0
    is_neg = t == 0.0
    valid = jnp.logical_or(is_pos, is_neg).astype(jnp.float32)
    target_prob = jnp.where(is_pos, jnp.float32(pos),
                            jnp.where(is_neg, jnp.float32(neg), t))

    # Stable log-sigmoid pair; one exp + one log1p shared between both terms.
    z = jnp.log1p(jnp.exp(-jnp.abs(x)))
    log_sig = jnp.minimum(x, 0.0) - z        # log sigmoid(x)
    log_sig_neg = -jnp.maximum(x, 0.0) - z   # log sigmoid(-x)

    loss = valid * (target_prob * log_sig + (1.0 - target_prob) * log_sig_neg)
    out_ref[...] = (-loss).astype(out_ref.dtype)


def _choose_tile_rows(n_rows, n_cols, itemsize):
    # Second-to-last block dim must be a multiple of 8 or equal the full dim.
    if n_rows <= 8:
        return n_rows
    # ~2 MiB per logits block: 3 arrays x 2 pipeline buffers stays well inside
    # even the smallest default scoped-VMEM budget (v5e 16 MiB, v7x 32 MiB).
    budget_bytes = 2 * 1024 * 1024
    bytes_per_row = max(1, n_cols * itemsize)
    tile = budget_bytes // bytes_per_row
    tile = max(8, min(tile, n_rows))
    return (tile // 8) * 8


def smooth_bce_with_logits_neg_loss(logits, target, pos, neg, *, tile_rows=None):
    """Elementwise -loss of SmoothBCEWithLogitsNegLoss (reduction=None)."""
    orig_shape = logits.shape
    if logits.ndim == 1:
        logits2 = logits.reshape(1, -1)
        target2 = target.reshape(1, -1)
    else:
        c_last = logits.shape[-1]
        logits2 = logits.reshape(-1, c_last)
        target2 = target.reshape(-1, c_last)

    n, c = logits2.shape
    if tile_rows is None:
        tile_rows = _choose_tile_rows(n, c, jnp.dtype(logits2.dtype).itemsize)
    grid = (pl.cdiv(n, tile_rows),)

    kernel = functools.partial(_smooth_bce_neg_kernel,
                               pos=float(pos), neg=float(neg))

    out = pl.pallas_call(
        kernel,
        grid=grid,
        in_specs=[
            pl.BlockSpec((tile_rows, c), lambda i: (i, 0)),
            pl.BlockSpec((tile_rows, c), lambda i: (i, 0)),
        ],
        out_specs=pl.BlockSpec((tile_rows, c), lambda i: (i, 0)),
        out_shape=jax.ShapeDtypeStruct((n, c), jnp.float32),
        compiler_params=pltpu.CompilerParams(
            dimension_semantics=("parallel",),      # megacore-friendly on v7x
            vmem_limit_bytes=32 * 1024 * 1024,      # explicit, safe on all gens
        ),
    )(logits2, target2)

    return out.reshape(orig_shape)


def _reference(logits, target, pos, neg):
    # Pure-JAX mirror of the PyTorch forward (reduction=None).
    x = logits.astype(jnp.float32)
    t = target.astype(jnp.float32)
    target_prob = jnp.where(t == 1, jnp.float32(pos),
                            jnp.where(t == 0, jnp.float32(neg), t))
    valid = ((t == 1) | (t == 0)).astype(jnp.float32)
    log_sig = jax.nn.log_sigmoid(x)
    log_sig_neg = jax.nn.log_sigmoid(-x)
    loss = valid * target_prob * log_sig + valid * (1.0 - target_prob) * log_sig_neg
    return -loss


if __name__ == "__main__":
    # Small deterministic example: N=16 samples, C=32 labels, pos/neg smoothing.
    key = jax.random.PRNGKey(0)
    k_logits, k_target = jax.random.split(key)
    N, C = 16, 32
    pos, neg = 0.95, 0.05

    logits = jax.random.normal(k_logits, (N, C), dtype=jnp.float32)
    # target values in {-1 (ignored), 0, 1}
    target = jax.random.randint(k_target, (N, C), -1, 2, dtype=jnp.int32)

    # f32 path (tile_rows=8 -> grid of 2 tiles, exercises the pipelined path)
    out = smooth_bce_with_logits_neg_loss(logits, target, pos, neg, tile_rows=8)
    out = jax.block_until_ready(out)
    ref = _reference(logits, target, pos, neg)
    assert out.shape == ref.shape, (out.shape, ref.shape)
    assert jnp.allclose(out, ref, rtol=1e-5, atol=1e-6), (out, ref)

    # bf16 path: no HBM-side f32 materialization; upcast happens inside VMEM.
    logits_bf16 = logits.astype(jnp.bfloat16)
    out_bf16 = jax.block_until_ready(
        smooth_bce_with_logits_neg_loss(logits_bf16, target, pos, neg, tile_rows=8))
    ref_bf16 = _reference(logits_bf16.astype(jnp.float32), target, pos, neg)
    assert jnp.allclose(out_bf16, ref_bf16, rtol=1e-5, atol=1e-5), (out_bf16, ref_bf16)

    # TODO(synk): the module's `reduction is not None` branch raises
    # NotImplementedError in PyTorch, so it is intentionally not implemented.
    print("KERNEL_OK")
</pallas_src>

<mosaic_0001>
module attributes {stable_mosaic.version = 11 : i64} {
  func.func @_smooth_bce_neg_kernel(%arg0: i32, %arg1: memref<8x32xf32, #tpu.memory_space<vmem>>, %arg2: memref<8x32xi32, #tpu.memory_space<vmem>>, %arg3: memref<8x32xf32, #tpu.memory_space<vmem>>) attributes {dimension_semantics = [#tpu.dimension_semantics<parallel>], iteration_bounds = array<i64: 2>, scalar_prefetch = 0 : i64, scratch_operands = 0 : i64, tpu.core_type = #tpu.core_type<tc>, window_params = [{transform_indices = @transform_0, window_bounds = array<i64: 8, 32>}, {transform_indices = @transform_1, window_bounds = array<i64: 8, 32>}, {transform_indices = @transform_2, window_bounds = array<i64: 8, 32>}]} {
    %c0 = arith.constant 0 : index
    %c0_0 = arith.constant 0 : index
    %0 = vector.load %arg1[%c0, %c0_0] : memref<8x32xf32, #tpu.memory_space<vmem>>, vector<8x32xf32>
    %c0_1 = arith.constant 0 : index
    %c0_2 = arith.constant 0 : index
    %1 = vector.load %arg2[%c0_1, %c0_2] : memref<8x32xi32, #tpu.memory_space<vmem>>, vector<8x32xi32>
    %2 = arith.sitofp %1 : vector<8x32xi32> to vector<8x32xf32>
    %cst = arith.constant 1.000000e+00 : f32
    %3 = vector.broadcast %cst : f32 to vector<8x32xf32>
    %4 = arith.cmpf oeq, %2, %3 : vector<8x32xf32>
    %cst_3 = arith.constant 0.000000e+00 : f32
    %5 = vector.broadcast %cst_3 : f32 to vector<8x32xf32>
    %6 = arith.cmpf oeq, %2, %5 : vector<8x32xf32>
    %7 = arith.ori %4, %6 : vector<8x32xi1>
    %8 = arith.extui %7 : vector<8x32xi1> to vector<8x32xi32>
    %9 = arith.sitofp %8 : vector<8x32xi32> to vector<8x32xf32>
    %cst_4 = arith.constant 5.000000e-02 : f32
    %10 = vector.broadcast %cst_4 : f32 to vector<8x32xf32>
    %11 = arith.select %6, %10, %2 : vector<8x32xi1>, vector<8x32xf32>
    %cst_5 = arith.constant 0.949999988 : f32
    %12 = vector.broadcast %cst_5 : f32 to vector<8x32xf32>
    %13 = arith.select %4, %12, %11 : vector<8x32xi1>, vector<8x32xf32>
    %14 = math.absf %0 : vector<8x32xf32>
    %cst_6 = arith.constant 0.000000e+00 : f32
    %15 = vector.broadcast %cst_6 : f32 to vector<8x32xf32>
    %16 = arith.subf %15, %14 : vector<8x32xf32>
    %17 = math.exp %16 : vector<8x32xf32>
    %18 = math.log1p %17 : vector<8x32xf32>
    %cst_7 = arith.constant 0.000000e+00 : f32
    %19 = vector.broadcast %cst_7 : f32 to vector<8x32xf32>
    %20 = arith.minimumf %0, %19 : vector<8x32xf32>
    %21 = arith.subf %20, %18 : vector<8x32xf32>
    %cst_8 = arith.constant 0.000000e+00 : f32
    %22 = vector.broadcast %cst_8 : f32 to vector<8x32xf32>
    %23 = arith.maximumf %0, %22 : vector<8x32xf32>
    %cst_9 = arith.constant 0.000000e+00 : f32
    %24 = vector.broadcast %cst_9 : f32 to vector<8x32xf32>
    %25 = arith.subf %24, %23 : vector<8x32xf32>
    %26 = arith.subf %25, %18 : vector<8x32xf32>
    %27 = arith.mulf %13, %21 : vector<8x32xf32>
    %cst_10 = arith.constant 1.000000e+00 : f32
    %28 = vector.broadcast %cst_10 : f32 to vector<8x32xf32>
    %29 = arith.subf %28, %13 : vector<8x32xf32>
    %30 = arith.mulf %29, %26 : vector<8x32xf32>
    %31 = arith.addf %27, %30 : vector<8x32xf32>
    %32 = arith.mulf %9, %31 : vector<8x32xf32>
    %cst_11 = arith.constant 0.000000e+00 : f32
    %33 = vector.broadcast %cst_11 : f32 to vector<8x32xf32>
    %34 = arith.subf %33, %32 : vector<8x32xf32>
    %c0_12 = arith.constant 0 : index
    %c0_13 = arith.constant 0 : index
    %35 = vector.load %arg3[%c0_12, %c0_13] : memref<8x32xf32, #tpu.memory_space<vmem>>, vector<8x32xf32>
    tpu.vector_store %arg3[%c0_12, %c0_13], %34 {strides = array<i32>} : memref<8x32xf32, #tpu.memory_space<vmem>>, vector<8x32xf32>,
    return
  }
  func.func @transform_0(%arg0: i32) -> (i32, i32) {
    %c0_i32 = arith.constant 0 : i32
    %c0_i32_0 = arith.constant 0 : i32
    return %arg0, %c0_i32 : i32, i32
  }
  func.func @transform_1(%arg0: i32) -> (i32, i32) {
    %c0_i32 = arith.constant 0 : i32
    %c0_i32_0 = arith.constant 0 : i32
    return %arg0, %c0_i32 : i32, i32
  }
  func.func @transform_2(%arg0: i32) -> (i32, i32) {
    %c0_i32 = arith.constant 0 : i32
    %c0_i32_0 = arith.constant 0 : i32
    return %arg0, %c0_i32 : i32, i32
  }
}

</mosaic_0001>

<llo_original>
// kernel: tpu_custom_call.1
$region0: #{tpu_custom_call.1}
  #allocation0 [shape = 'u32[]', space=smem, size = 0x4, offset = 0x4, fixed_abs, tag = 'smem constant byte address 0x4 - core index']
  #allocation1 [shape = 'u32[144,128]{1,0:T(1,128)}', space=vmem, size = 0x12000, scoped, tag = 'internal scratch']
  %s0 = inlined_call_operand.hbm [shape: f32[16,32], index: 0, kind: input, shape index: {}]
  %s1 = inlined_call_operand.hbm [shape: s32[16,32], index: 1, kind: input, shape index: {}]
  %s2 = inlined_call_operand.hbm [shape: f32[16,32], index: 2, kind: output, shape index: {}]
  %s3 = sld [smem:[#allocation0]]
  $region49: #{tpu_custom_call.1} parent=0
    _
  %s5 = ssub.s32 1, %s3
  %s6 = scalar_select 0, %s5, %s3
  $region1: #{tpu_custom_call.1} parent=0
    #allocation2 [shape = 'u8[8192]{0}', space=vmem, size = 0x2000, scoped, tag = 'input window, operand 0']
    #allocation3 [shape = 's32[2]{0}', space=sflag, size = 0x8, scoped, tag = 'scoped memory for tpu_custom_call.1']
    #allocation4 [shape = 's32[2]{0}', space=sflag, size = 0x8, scoped, tag = 'scoped memory for tpu_custom_call.1']
    #allocation5 [shape = 'u8[8192]{0}', space=vmem, size = 0x2000, scoped, tag = 'input window, operand 1']
    #allocation6 [shape = 's32[2]{0}', space=sflag, size = 0x8, scoped, tag = 'scoped memory for tpu_custom_call.1']
    #allocation7 [shape = 'u8[8192]{0}', space=vmem, size = 0x2000, scoped, tag = 'output window, operand 0']
    %7 = vsyncpa [#allocation3], 0
    %s8 = scalar_lea.sflag [#allocation3], 1
    %9 = vsyncpa %s8, 0
    %10 = vsyncpa [#allocation6], 0
    %s11 = scalar_lea.sflag [#allocation6], 1
    %12 = vsyncpa %s11, 0
    %13 = vsyncpa [#allocation4], 0
    %s14 = scalar_lea.sflag [#allocation4], 1
    %15 = vsyncpa %s14, 0
    loop: start=0, step=1, limit=4
    $region2: #{tpu_custom_call.1} parent=1 // loop_pre_header
      _
    $region3: #{tpu_custom_call.1} parent=1 // loop_header
      %s17 = sphi 0, %s21
      %p18 = scmp.ge.s32.totalorder %s17, 4
      %s27 = sphi 0, %s29
      %s30 = sphi 0, %s27
      %s31 = sphi 0, %s30
      %s47 = sphi 0, %s31
      %s53 = sphi 0, %s55
      %s56 = sphi 0, %s53
      %s57 = sphi 0, %s56
      %s73 = sphi 0, %s57
      %s79 = sphi 0, %s81
      %s82 = sphi 0, %s79
      %s83 = sphi 0, %s82
      %s99 = sphi 0, %s83
    $region4: #{tpu_custom_call.1} parent=1 // loop_header_branch
      %20 = sbr.rel (%p18) target = $region8
    $region5: #{tpu_custom_call.1} parent=1 // loop_body
      %s22 = ssub.s32 %s17, 1
      %s23 = ssub.s32 %s17, 2
      %s24 = sadd.s32 %s17, 1
      %s25 = ssub.s32 %s17, %s24
      %p26 = scmp.eq.s32.totalorder %s25, 0
      %s28 = sadd.s32 %s27, 1
      %s29 = scalar_select %p26, %s27, %s28
      %p32 = pneg %p26
      %p33 = scmp.eq.s32.totalorder %s17, 1
      %p34 = por %p32, %p33
      %p35 = scmp.ne.s32.totalorder %s27, %s30
      %p36 = scmp.eq.s32.totalorder %s17, 0
      %p37 = por %p35, %p36
      %p38 = scmp.ne.s32.totalorder %s27, %s30
      %p39 = scmp.eq.s32.totalorder %s22, 1
      %p40 = por %p38, %p39
      %p41 = scmp.ne.s32.totalorder %s30, %s31
      %p42 = scmp.eq.s32.totalorder %s22, 0
      %p43 = por %p41, %p42
      %p44 = scmp.ne.s32.totalorder %s30, %s31
      %p45 = scmp.eq.s32.totalorder %s23, 1
      %p46 = por %p44, %p45
      %p48 = scmp.ne.s32.totalorder %s31, %s47
      %p49 = scmp.eq.s32.totalorder %s23, 0
      %p50 = por %p48, %p49
      %s51 = ssub.s32 %s17, %s24
      %p52 = scmp.eq.s32.totalorder %s51, 0
      %s54 = sadd.s32 %s53, 1
      %s55 = scalar_select %p52, %s53, %s54
      %p58 = pneg %p52
      %p59 = scmp.eq.s32.totalorder %s17, 1
      %p60 = por %p58, %p59
      %p61 = scmp.ne.s32.totalorder %s53, %s56
      %p62 = scmp.eq.s32.totalorder %s17, 0
      %p63 = por %p61, %p62
      %p64 = scmp.ne.s32.totalorder %s53, %s56
      %p65 = scmp.eq.s32.totalorder %s22, 1
      %p66 = por %p64, %p65
      %p67 = scmp.ne.s32.totalorder %s56, %s57
      %p68 = scmp.eq.s32.totalorder %s22, 0
      %p69 = por %p67, %p68
      %p70 = scmp.ne.s32.totalorder %s56, %s57
      %p71 = scmp.eq.s32.totalorder %s23, 1
      %p72 = por %p70, %p71
      %p74 = scmp.ne.s32.totalorder %s57, %s73
      %p75 = scmp.eq.s32.totalorder %s23, 0
      %p76 = por %p74, %p75
      %s77 = ssub.s32 %s17, %s24
      %p78 = scmp.eq.s32.totalorder %s77, 0
      %s80 = sadd.s32 %s79, 1
      %s81 = scalar_select %p78, %s79, %s80
      %p84 = pneg %p78
      %p85 = scmp.eq.s32.totalorder %s17, 1
      %p86 = por %p84, %p85
      %p87 = scmp.ne.s32.totalorder %s79, %s82
      %p88 = scmp.eq.s32.totalorder %s17, 0
      %p89 = por %p87, %p88
      %p90 = scmp.ne.s32.totalorder %s79, %s82
      %p91 = scmp.eq.s32.totalorder %s22, 1
      %p92 = por %p90, %p91
      %p93 = scmp.ne.s32.totalorder %s82, %s83
      %p94 = scmp.eq.s32.totalorder %s22, 0
      %p95 = por %p93, %p94
      %p96 = scmp.ne.s32.totalorder %s82, %s83
      %p97 = scmp.eq.s32.totalorder %s23, 1
      %p98 = por %p96, %p97
      %p100 = scmp.ne.s32.totalorder %s83, %s99
      %p101 = scmp.eq.s32.totalorder %s23, 0
      %p102 = por %p100, %p101
      %p103 = scmp.le.s32.totalorder 1, %s17
      %p104 = scmp.lt.s32.totalorder %s17, 3
      %p105 = pnand %p103, %p104
      %p106 = pneg %p105
      // Predicated region
      $region9: #{tpu_custom_call.1} parent=5 // pred_check
        _
      $region10: #{tpu_custom_call.1} parent=5 // pred_check_branch
        %108 = sbr.rel (%p105) target = $region12
      $region11: #{tpu_custom_call.1} parent=5 // pred_region
        %s109 = ssub.s32 %s17, 1
      $region12: #{tpu_custom_call.1} parent=5 // pred_fallthru
        _
      %p110 = scmp.lt.s32.totalorder %s17, 2
      // Predicated region
      $region13: #{tpu_custom_call.1} parent=5 // pred_check
        %p111 = pneg %p110
      $region14: #{tpu_custom_call.1} parent=5 // pred_check_branch
        %113 = sbr.rel (%p111) target = $region16
      $region15: #{tpu_custom_call.1} parent=5 // pred_region
        // Predicated region
        $region17: #{tpu_custom_call.1} parent=15 // pred_check
          %p114 = pneg %p37
        $region18: #{tpu_custom_call.1} parent=15 // pred_check_branch
          %116 = sbr.rel (%p114) target = $region20
        $region19: #{tpu_custom_call.1} parent=15 // pred_region
          %s117 = sand.u32 %s27, 1
          %s118 = scalar_lea.sflag [#allocation3], %s117
          %s119 = sand.u32 %s27, 1
          %s120 = smul.addr %s119, 8
          %s121 = scalar_lea.vmem [#allocation2], %s120
          %s123 = ssub.s32 128, 128
          %124 = vsyncadd %s118, %s123
          %s125 = smul.addr %s17, 128
          %s126 = scalar_lea.hbm %s0, %s125
          %s128 = sshll.u32 %s121, 4
          %s129 = int_to_ptr.vmem [resolvable:$true] %s128
          %131 = dma.hbm_to_vmem [thread:$0]  %s126, 128, %s129, %s118
        $region20: #{tpu_custom_call.1} parent=15 // pred_fallthru
          _
        // Predicated region
        $region21: #{tpu_custom_call.1} parent=15 // pred_check
          %p132 = pneg %p63
        $region22: #{tpu_custom_call.1} parent=15 // pred_check_branch
          %134 = sbr.rel (%p132) target = $region24
        $region23: #{tpu_custom_call.1} parent=15 // pred_region
          %s135 = sand.u32 %s53, 1
          %s136 = scalar_lea.sflag [#allocation6], %s135
          %s137 = sand.u32 %s53, 1
          %s138 = smul.addr %s137, 8
          %s139 = scalar_lea.vmem [#allocation5], %s138
          %s141 = ssub.s32 128, 128
          %142 = vsyncadd %s136, %s141
          %s143 = smul.addr %s17, 128
          %s144 = scalar_lea.hbm %s1, %s143
          %s146 = sshll.u32 %s139, 4
          %s147 = int_to_ptr.vmem [resolvable:$true] %s146
          %149 = dma.hbm_to_vmem [thread:$0]  %s144, 128, %s147, %s136
        $region24: #{tpu_custom_call.1} parent=15 // pred_fallthru
          _
      $region16: #{tpu_custom_call.1} parent=5 // pred_fallthru
        _
      %p150 = scmp.le.s32.totalorder 1, %s17
      %p151 = scmp.lt.s32.totalorder %s17, 3
      %p152 = pnand %p150, %p151
      %p153 = pneg %p152
      // Predicated region
      $region25: #{tpu_custom_call.1} parent=5 // pred_check
        _
      $region26: #{tpu_custom_call.1} parent=5 // pred_check_branch
        %155 = sbr.rel (%p152) target = $region28
      $region27: #{tpu_custom_call.1} parent=5 // pred_region
        %s156 = ssub.s32 %s17, 1
        %s157 = sand.u32 %s30, 1
        %s158 = scalar_lea.sflag [#allocation3], %s157
        %s159 = sand.u32 %s30, 1
        %s160 = smul.addr %s159, 8
        %s161 = scalar_lea.vmem [#allocation2], %s160
        // Predicated region
        $region29: #{tpu_custom_call.1} parent=27 // pred_check
          %p162 = pneg %p43
        $region30: #{tpu_custom_call.1} parent=27 // pred_check_branch
          %164 = sbr.rel (%p162) target = $region32
        $region31: #{tpu_custom_call.1} parent=27 // pred_region
          %165 = dma.done %s158, 128
        $region32: #{tpu_custom_call.1} parent=27 // pred_fallthru
          _
        %s166 = sand.u32 %s56, 1
        %s167 = scalar_lea.sflag [#allocation6], %s166
        %s168 = sand.u32 %s56, 1
        %s169 = smul.addr %s168, 8
        %s170 = scalar_lea.vmem [#allocation5], %s169
        // Predicated region
        $region33: #{tpu_custom_call.1} parent=27 // pred_check
          %p171 = pneg %p69
        $region34: #{tpu_custom_call.1} parent=27 // pred_check_branch
          %173 = sbr.rel (%p171) target = $region36
        $region35: #{tpu_custom_call.1} parent=27 // pred_region
          %174 = dma.done %s167, 128
        $region36: #{tpu_custom_call.1} parent=27 // pred_fallthru
          _
        %s175 = sand.u32 %s30, 1
        %s176 = scalar_lea.sflag [#allocation3], %s175
        %s177 = sand.u32 %s30, 1
        %s178 = smul.addr %s177, 8
        %s179 = scalar_lea.vmem [#allocation2], %s178
        %p180 = pneg %p43
        %p181 = pneg %p40
        %s182 = sand.u32 %s56, 1
        %s183 = scalar_lea.sflag [#allocation6], %s182
        %s184 = sand.u32 %s56, 1
        %s185 = smul.addr %s184, 8
        %s186 = scalar_lea.vmem [#allocation5], %s185
        %p187 = pneg %p69
        %p188 = pneg %p66
        %p189 = pneg %p95
        %p190 = pneg %p92
        %s191 = sand.u32 %s82, 1
        %s192 = scalar_lea.sflag [#allocation4], %s191
        %s193 = sand.u32 %s82, 1
        %s194 = smul.addr %s193, 8
        %s195 = scalar_lea.vmem [#allocation7], %s194
        %v196 = vld [vmem:[%s161] sm:$0xff]
        %v197 = vld [vmem:[%s170] sm:$0xff]
        %v198 = vcvt.s32.f32 %v197
        %vm199 = vcmp.eq.f32.partialorder %v198, 1.0
        %vm200 = vcmp.eq.f32.partialorder %v198, 0.0
        %vm201 = vmor %vm199, %vm200
        %v202 = vsel %vm201, 1, 0
        %v203 = vcvt.s32.f32 %v202
        %v204 = vsel %vm200, 0.05, %v198
        %v205 = vsel %vm199, 0.95, %v204
        %v206 = vand.u32 2147483647, %v196
        %v207 = vsub.f32 0.0, %v206
        %v208 = vmul.f32 %v207, 1.442695
        %v209 = vpow.pop %v208
        %v210 = vadd.f32 %v209, 1.0
        %v211 = vlog2.pop %v210
        %v212 = vmul.f32 %v211, 0.6931472
        %v213 = vmul.f32 -0.5, %v209
        %v214 = vadd.f32 %v213, 1.0
        %v215 = vmul.f32 %v214, %v209
        %v216 = vand.u32 2147483647, %v209
        %vm217 = vcmp.lt.f32.partialorder %v216, 0.0004427343
        %v218 = vsel %vm217, %v215, %v212
        %v219 = vmin.f32 %v196, 0.0
        %v220 = vsub.f32 %v219, %v218
        %v221 = vmax.f32 %v196, 0.0
        %v222 = vsub.f32 0.0, %v221
        %v223 = vsub.f32 %v222, %v218
        %v224 = vmul.f32 %v205, %v220
        %v225 = vsub.f32 1.0, %v205
        %v226 = vmul.f32 %v225, %v223
        %v227 = vadd.f32 %v224, %v226
        %v228 = vmul.f32 %v203, %v227
        %v229 = vsub.f32 0.0, %v228
        %vm230 = vcmask 261120
        %231 = vst.msk [vmem:[%s195] sm:$0xff] %vm230, %v229
        %s232 = sand.u32 %s82, 1
        %s233 = scalar_lea.sflag [#allocation4], %s232
        %s234 = sand.u32 %s82, 1
        %s235 = smul.addr %s234, 8
        %s236 = scalar_lea.vmem [#allocation7], %s235
        // Predicated region
        $region37: #{tpu_custom_call.1} parent=27 // pred_check
          %p237 = pneg %p92
        $region38: #{tpu_custom_call.1} parent=27 // pred_check_branch
          %239 = sbr.rel (%p237) target = $region40
        $region39: #{tpu_custom_call.1} parent=27 // pred_region
          %s241 = ssub.s32 128, 128
          %242 = vsyncadd %s233, %s241
          %s243 = smul.addr %s22, 128
          %s244 = scalar_lea.hbm %s2, %s243
          %s246 = sshll.u32 %s236, 4
          %s247 = int_to_ptr.vmem [resolvable:$true] %s246
          %249 = dma.vmem_to_hbm [thread:$0]  %s247, 128, %s244, %s233
        $region40: #{tpu_custom_call.1} parent=27 // pred_fallthru
          _
      $region28: #{tpu_custom_call.1} parent=5 // pred_fallthru
        _
      %p250 = scmp.le.s32.totalorder 2, %s17
      // Predicated region
      $region41: #{tpu_custom_call.1} parent=5 // pred_check
        %p251 = pneg %p250
      $region42: #{tpu_custom_call.1} parent=5 // pred_check_branch
        %253 = sbr.rel (%p251) target = $region44
      $region43: #{tpu_custom_call.1} parent=5 // pred_region
        %s254 = ssub.s32 %s17, 2
        // Predicated region
        $region45: #{tpu_custom_call.1} parent=43 // pred_check
          %p255 = pneg %p98
        $region46: #{tpu_custom_call.1} parent=43 // pred_check_branch
          %257 = sbr.rel (%p255) target = $region48
        $region47: #{tpu_custom_call.1} parent=43 // pred_region
          %s258 = sand.u32 %s83, 1
          %s259 = scalar_lea.sflag [#allocation4], %s258
          %s260 = sand.u32 %s83, 1
          %s261 = smul.addr %s260, 8
          %s262 = scalar_lea.vmem [#allocation7], %s261
          %263 = dma.done %s259, 128
        $region48: #{tpu_custom_call.1} parent=43 // pred_fallthru
          _
      $region44: #{tpu_custom_call.1} parent=5 // pred_fallthru
        _
    $region6: #{tpu_custom_call.1} parent=1 // loop_footer
      %s21 = sadd.s32 1, %s17
    $region7: #{tpu_custom_call.1} parent=1 // loop_footer_branch
      %16 = sbr.rel target = $region3
    $region8: #{tpu_custom_call.1} parent=1 // loop_exit
      _
    %264 = vsyncpa [#allocation3], 1
    %s265 = scalar_lea.sflag [#allocation3], 1
    %266 = vsyncpa %s265, 1
    %267 = vsyncpa [#allocation6], 1
    %s268 = scalar_lea.sflag [#allocation6], 1
    %269 = vsyncpa %s268, 1
    %270 = vsyncpa [#allocation4], 1
    %s271 = scalar_lea.sflag [#allocation4], 1
    %272 = vsyncpa %s271, 1

</llo_original>
